<compile_context>
chip_gen: v7x
topology: tpu7x:2x2x1
jax: 0.10.0
libtpu: 0.0.40
codegen_flags: <defaults>
</compile_context>

<pallas_src>
import jax
import jax.numpy as jnp
from jax.experimental import pallas as pl
from jax.experimental.pallas import tpu as pltpu


def _linear_add_relu_kernel(x_ref, wt_ref, add_ref, o_ref):
    # Single MXU pass with f32 accumulation + VPU epilogue (add, relu).
    acc = jnp.dot(x_ref[...], wt_ref[...], preferred_element_type=jnp.float32)
    o_ref[...] = jnp.maximum(acc + add_ref[...], 0.0).astype(o_ref.dtype)


def prepare_params(weight, bias, other):
    """One-time parameter preparation (outside the per-call hot path).

    weight : (OUT, IN)  PyTorch Linear layout
    bias   : (OUT,)
    other  : (B, OUT)
    Returns:
      wt  : (IN, OUT)  pre-transposed weight
      add : (B, OUT)   other with the bias folded in
    """
    wt = jnp.asarray(weight).T                      # (IN, OUT)
    add = jnp.asarray(other) + jnp.asarray(bias)[None, :]  # (B, OUT)
    return wt, add


@jax.jit
def linear_add_relu(x, wt, add):
    """relu(x @ W^T + b + other) as a single grid-free Pallas tile.

    x   : (B, IN)   float32 activations
    wt  : (IN, OUT) pre-transposed weight
    add : (B, OUT)  other + bias (folded at prep time)
    Returns (B, OUT) float32.
    """
    B = x.shape[0]
    OUT = wt.shape[1]
    return pl.pallas_call(
        _linear_add_relu_kernel,
        out_shape=jax.ShapeDtypeStruct((B, OUT), jnp.float32),
        in_specs=[
            pl.BlockSpec(memory_space=pltpu.MemorySpace.VMEM),  # x
            pl.BlockSpec(memory_space=pltpu.MemorySpace.VMEM),  # wt
            pl.BlockSpec(memory_space=pltpu.MemorySpace.VMEM),  # add (= other + bias)
        ],
        out_specs=pl.BlockSpec(memory_space=pltpu.MemorySpace.VMEM),
    )(x, wt, add)


if __name__ == "__main__":
    B, IN, OUT = 64, 32, 64

    key = jax.random.PRNGKey(0)
    k_x, k_w, k_b, k_o = jax.random.split(key, 4)

    # Deterministic synthetic parameters (same shapes as nn.Linear(32, 64)).
    bound = 1.0 / jnp.sqrt(IN)
    x1 = jax.random.normal(k_x, (B, IN), dtype=jnp.float32)
    weight = jax.random.uniform(k_w, (OUT, IN), minval=-bound, maxval=bound,
                                dtype=jnp.float32)
    bias = jax.random.uniform(k_b, (OUT,), minval=-bound, maxval=bound,
                              dtype=jnp.float32)
    other = jax.random.uniform(k_o, (B, OUT), dtype=jnp.float32)

    # One-time prep (transpose + bias fold) — not part of the hot path.
    wt, add = prepare_params(weight, bias, other)
    wt, add = jax.block_until_ready((wt, add))

    out = linear_add_relu(x1, wt, add)
    out = jax.block_until_ready(out)

    # Cross-check against a pure-JAX reference.
    ref = jnp.maximum(x1 @ weight.T + bias + other, 0.0)
    assert out.shape == (B, OUT)
    assert jnp.allclose(out, ref, atol=1e-5, rtol=1e-5)

    print("KERNEL_OK")
</pallas_src>

<mosaic_0001>
module attributes {stable_mosaic.version = 11 : i64} {
  func.func @_linear_add_relu_kernel(%arg0: memref<64x32xf32, #tpu.memory_space<vmem>>, %arg1: memref<32x64xf32, #tpu.memory_space<vmem>>, %arg2: memref<64x64xf32, #tpu.memory_space<vmem>>, %arg3: memref<64x64xf32, #tpu.memory_space<vmem>>) attributes {dimension_semantics = [], scalar_prefetch = 0 : i64, scratch_operands = 0 : i64, tpu.core_type = #tpu.core_type<tc>} {
    %c0 = arith.constant 0 : index
    %c0_0 = arith.constant 0 : index
    %0 = vector.load %arg0[%c0, %c0_0] : memref<64x32xf32, #tpu.memory_space<vmem>>, vector<64x32xf32>
    %c0_1 = arith.constant 0 : index
    %c0_2 = arith.constant 0 : index
    %1 = vector.load %arg1[%c0_1, %c0_2] : memref<32x64xf32, #tpu.memory_space<vmem>>, vector<32x64xf32>
    %cst = arith.constant dense<0.000000e+00> : vector<64x64xf32>
    %2 = tpu.matmul %0, %1, %cst {dimension_numbers = #tpu.dot_dimension_numbers<[1], [0], [0], [1], [0, 0, 1, 1], [], []>} : vector<64x32xf32>, vector<32x64xf32>, vector<64x64xf32> -> vector<64x64xf32>
    %c0_3 = arith.constant 0 : index
    %c0_4 = arith.constant 0 : index
    %3 = vector.load %arg2[%c0_3, %c0_4] : memref<64x64xf32, #tpu.memory_space<vmem>>, vector<64x64xf32>
    %4 = arith.addf %2, %3 : vector<64x64xf32>
    %cst_5 = arith.constant 0.000000e+00 : f32
    %5 = vector.broadcast %cst_5 : f32 to vector<64x64xf32>
    %6 = arith.maximumf %4, %5 : vector<64x64xf32>
    %c0_6 = arith.constant 0 : index
    %c0_7 = arith.constant 0 : index
    %7 = vector.load %arg3[%c0_6, %c0_7] : memref<64x64xf32, #tpu.memory_space<vmem>>, vector<64x64xf32>
    tpu.vector_store %arg3[%c0_6, %c0_7], %6 {strides = array<i32>} : memref<64x64xf32, #tpu.memory_space<vmem>>, vector<64x64xf32>,
    return
  }
}

</mosaic_0001>

<llo_original>
// kernel: linear_add_relu.1
$region0: #{linear_add_relu.1}
  #allocation0 [shape = 'u32[]', space=smem, size = 0x4, offset = 0x4, fixed_abs, tag = 'smem constant byte address 0x4 - core index']
  #allocation1 [shape = 'u32[144,128]{1,0:T(1,128)}', space=vmem, size = 0x12000, scoped, tag = 'internal scratch']
  %s0 = inlined_call_operand.vmem [shape: f32[64,32], index: 0, kind: input, shape index: {}]
  %s1 = inlined_call_operand.vmem [shape: f32[32,64], index: 1, kind: input, shape index: {}]
  %s2 = inlined_call_operand.vmem [shape: f32[64,64], index: 2, kind: input, shape index: {}]
  %s3 = inlined_call_operand.hbm [shape: f32[64,64], index: 3, kind: output, shape index: {}]
  %s4 = sld [smem:[#allocation0]]
  $region22: #{linear_add_relu.1} parent=0
    _
  %s6 = ssub.s32 1, %s4
  %s7 = scalar_select 0, %s6, %s4
  $region1: #{linear_add_relu.1} parent=0
    #allocation2 [shape = 'u8[32768]{0}', space=vmem, size = 0x8000, scoped, tag = 'output window, operand 0, single buffered']
    #allocation3 [shape = 's32[1]{0}', space=sflag, size = 0x4, scoped, tag = 'scoped memory for linear_add_relu.1']
    %8 = vsyncpa [#allocation3], 0
    // Predicated region
    $region2: #{linear_add_relu.1} parent=1 // pred_check
      _
    $region3: #{linear_add_relu.1} parent=1 // pred_check_branch
      %10 = sbr.rel (0) target = $region5
    $region4: #{linear_add_relu.1} parent=1 // pred_region
      _
    $region5: #{linear_add_relu.1} parent=1 // pred_fallthru
      _
    // Predicated region
    $region6: #{linear_add_relu.1} parent=1 // pred_check
      _
    $region7: #{linear_add_relu.1} parent=1 // pred_check_branch
      %12 = sbr.rel (0) target = $region9
    $region8: #{linear_add_relu.1} parent=1 // pred_region
      _
    $region9: #{linear_add_relu.1} parent=1 // pred_fallthru
      _
    // Predicated region
    $region10: #{linear_add_relu.1} parent=1 // pred_check
      _
    $region11: #{linear_add_relu.1} parent=1 // pred_check_branch
      %14 = sbr.rel (0) target = $region13
    $region12: #{linear_add_relu.1} parent=1 // pred_region
      _
    $region13: #{linear_add_relu.1} parent=1 // pred_fallthru
      _
    %v15 = vld [vmem:[%s0] sm:$0xff]
    %v16 = vld [vmem:[%s0 + $0x8] sm:$0xff]
    %v17 = vld [vmem:[%s0 + $0x10] sm:$0xff]
    %v18 = vld [vmem:[%s0 + $0x18] sm:$0xff]
    %v19 = vld [vmem:[%s0 + $0x20] sm:$0xff]
    %v20 = vld [vmem:[%s0 + $0x28] sm:$0xff]
    %v21 = vld [vmem:[%s0 + $0x30] sm:$0xff]
    %v22 = vld [vmem:[%s0 + $0x38] sm:$0xff]
    %v23 = vld [vmem:[%s1] sm:$0xff]
    %v24 = vld [vmem:[%s1 + $0x8] sm:$0xff]
    %v25 = vld [vmem:[%s1 + $0x10] sm:$0xff]
    %v26 = vld [vmem:[%s1 + $0x18] sm:$0xff]
    %v27 = vld [vmem:[%s2] sm:$0xff]
    %v28 = vld [vmem:[%s2 + $0x8] sm:$0xff]
    %v29 = vld [vmem:[%s2 + $0x10] sm:$0xff]
    %v30 = vld [vmem:[%s2 + $0x18] sm:$0xff]
    %v31 = vld [vmem:[%s2 + $0x20] sm:$0xff]
    %v32 = vld [vmem:[%s2 + $0x28] sm:$0xff]
    %v33 = vld [vmem:[%s2 + $0x30] sm:$0xff]
    %v34 = vld [vmem:[%s2 + $0x38] sm:$0xff]
    %vm35 = vcmask 261120
    %v37 = vsel %vm35, %v15, 0
    %v40 = vsel %vm35, %v16, 0
    %v43 = vsel %vm35, %v17, 0
    %v46 = vsel %vm35, %v18, 0
    %v49 = vsel %vm35, %v19, 0
    %v52 = vsel %vm35, %v20, 0
    %v55 = vsel %vm35, %v21, 0
    %v58 = vsel %vm35, %v22, 0
    %60 = vmatprep.subr.mxu0 0.0
    %61 = vmatpush1.msra.mxu0 %v23
    %62 = vmatprep.subr.mxu0 0.0
    %63 = vmatpush1.msra.mxu0 %v24
    %64 = vmatprep.subr.mxu0 0.0
    %65 = vmatpush1.msra.mxu0 %v25
    %66 = vmatprep.subr.mxu0 0.0
    %67 = vmatpush1.msra.mxu0 %v26
    %68 = vmatprep.subr.mxu0 0.0
    %69 = vmatpush1.msra.mxu0 0.0
    %70 = vmatprep.subr.mxu0 0.0
    %71 = vmatpush1.msra.mxu0 0.0
    %72 = vmatprep.subr.mxu0 0.0
    %73 = vmatpush1.msra.mxu0 0.0
    %74 = vmatprep.subr.mxu0 0.0
    %75 = vmatpush1.msra.mxu0 0.0
    %76 = vmatprep.subr.mxu0 0.0
    %77 = vmatpush1.msra.mxu0 0.0
    %78 = vmatprep.subr.mxu0 0.0
    %79 = vmatpush1.msra.mxu0 0.0
    %80 = vmatprep.subr.mxu0 0.0
    %81 = vmatpush1.msra.mxu0 0.0
    %82 = vmatprep.subr.mxu0 0.0
    %83 = vmatpush1.msra.mxu0 0.0
    %84 = vmatprep.subr.mxu0 0.0
    %85 = vmatpush1.msra.mxu0 0.0
    %86 = vmatprep.subr.mxu0 0.0
    %87 = vmatpush1.msra.mxu0 0.0
    %88 = vmatprep.subr.mxu0 0.0
    %89 = vmatpush1.msra.mxu0 0.0
    %90 = vmatprep.subr.mxu0 0.0
    %91 = vmatpush1.msra.mxu0 0.0
    %92 = vmatprep.subr.mxu0 0.0
    %93 = vmatpush1.msra.mxu0 0.0
    %94 = vmatprep.subr.mxu0 0.0
    %95 = vmatpush1.msra.mxu0 0.0
    %96 = vmatprep.subr.mxu0 0.0
    %97 = vmatpush1.msra.mxu0 0.0
    %98 = vmatprep.subr.mxu0 0.0
    %99 = vmatpush1.msra.mxu0 0.0
    %100 = vmatprep.subr.mxu0 0.0
    %101 = vmatpush1.msra.mxu0 0.0
    %102 = vmatprep.subr.mxu0 0.0
    %103 = vmatpush1.msra.mxu0 0.0
    %104 = vmatprep.subr.mxu0 0.0
    %105 = vmatpush1.msra.mxu0 0.0
    %106 = vmatprep.subr.mxu0 0.0
    %107 = vmatpush1.msra.mxu0 0.0
    %108 = vmatprep.subr.mxu0 0.0
    %109 = vmatpush1.msra.mxu0 0.0
    %110 = vmatprep.subr.mxu0 0.0
    %111 = vmatpush1.msra.mxu0 0.0
    %112 = vmatprep.subr.mxu0 0.0
    %113 = vmatpush1.msra.mxu0 0.0
    %114 = vmatprep.subr.mxu0 0.0
    %115 = vmatpush1.msra.mxu0 0.0
    %116 = vmatprep.subr.mxu0 0.0
    %117 = vmatpush1.msra.mxu0 0.0
    %118 = vmatprep.subr.mxu0 0.0
    %119 = vmatpush1.msra.mxu0 0.0
    %120 = vmatprep.subr.mxu0 0.0
    %121 = vmatpush1.msra.mxu0 0.0
    %122 = vmatprep.subr.mxu0 0.0
    %123 = vmatpush1.msra.mxu0 0.0
    %124 = vmatprep.mubr.f32.mxu0 0.0
    %125 = vmatmul.mubr.f32.gmra.mrb[0].mxu0 %v37
    %v126 = vpop.f32.mrb[0].mxu0
    %v127 = vadd.f32 %v27, %v126
    %v128 = vpop.f32.mrb[0].mxu0
    %129 = vmatprep.mubr.f32.mxu0 0.0
    %130 = vmatmul.mubr.f32.gmra.mrb[0].mxu0 %v40
    %v131 = vpop.f32.mrb[0].mxu0
    %v132 = vadd.f32 %v28, %v131
    %v133 = vpop.f32.mrb[0].mxu0
    %134 = vmatprep.mubr.f32.mxu0 0.0
    %135 = vmatmul.mubr.f32.gmra.mrb[0].mxu0 %v43
    %v136 = vpop.f32.mrb[0].mxu0
    %v137 = vadd.f32 %v29, %v136
    %v138 = vpop.f32.mrb[0].mxu0
    %139 = vmatprep.mubr.f32.mxu0 0.0
    %140 = vmatmul.mubr.f32.gmra.mrb[0].mxu0 %v46
    %v141 = vpop.f32.mrb[0].mxu0
    %v142 = vadd.f32 %v30, %v141
    %v143 = vpop.f32.mrb[0].mxu0
    %144 = vmatprep.mubr.f32.mxu0 0.0
    %145 = vmatmul.mubr.f32.gmra.mrb[0].mxu0 %v49
    %v146 = vpop.f32.mrb[0].mxu0
    %v147 = vadd.f32 %v31, %v146
    %v148 = vpop.f32.mrb[0].mxu0
    %149 = vmatprep.mubr.f32.mxu0 0.0
    %150 = vmatmul.mubr.f32.gmra.mrb[0].mxu0 %v52
    %v151 = vpop.f32.mrb[0].mxu0
    %v152 = vadd.f32 %v32, %v151
    %v153 = vpop.f32.mrb[0].mxu0
    %154 = vmatprep.mubr.f32.mxu0 0.0
    %155 = vmatmul.mubr.f32.gmra.mrb[0].mxu0 %v55
    %v156 = vpop.f32.mrb[0].mxu0
    %v157 = vadd.f32 %v33, %v156
    %v158 = vpop.f32.mrb[0].mxu0
    %159 = vmatprep.mubr.f32.mxu0 0.0
    %160 = vmatmul.mubr.f32.gmra.mrb[0].mxu0 %v58
    %v161 = vpop.f32.mrb[0].mxu0
    %v162 = vadd.f32 %v34, %v161
    %v163 = vpop.f32.mrb[0].mxu0
    %164 = vdwg.mxu0
    %v165 = vmax.f32 %v127, 0.0
    %v166 = vmax.f32 %v132, 0.0
    %v167 = vmax.f32 %v137, 0.0
    %v168 = vmax.f32 %v142, 0.0
    %v169 = vmax.f32 %v147, 0.0
    %v170 = vmax.f32 %v152, 0.0
    %v171 = vmax.f32 %v157, 0.0
    %v172 = vmax.f32 %v162, 0.0
    %vm173 = vcmask 523264
    %174 = vst.msk [vmem:[#allocation2] sm:$0xff] %vm173, %v165
    %175 = vst.msk [vmem:[#allocation2 + $0x8] sm:$0xff] %vm173, %v166
    %176 = vst.msk [vmem:[#allocation2 + $0x10] sm:$0xff] %vm173, %v167
    %177 = vst.msk [vmem:[#allocation2 + $0x18] sm:$0xff] %vm173, %v168
    %178 = vst.msk [vmem:[#allocation2 + $0x20] sm:$0xff] %vm173, %v169
    %179 = vst.msk [vmem:[#allocation2 + $0x28] sm:$0xff] %vm173, %v170
    %180 = vst.msk [vmem:[#allocation2 + $0x30] sm:$0xff] %vm173, %v171
    %181 = vst.msk [vmem:[#allocation2 + $0x38] sm:$0xff] %vm173, %v172
    // Predicated region
    $region14: #{linear_add_relu.1} parent=1 // pred_check
      _
    $region15: #{linear_add_relu.1} parent=1 // pred_check_branch
      %183 = sbr.rel (0) target = $region17
    $region16: #{linear_add_relu.1} parent=1 // pred_region
      %s185 = ssub.s32 1024, 1024
      %186 = vsyncadd [#allocation3], %s185
      %s187 = sshll.u32 [#allocation2], 4
      %s188 = int_to_ptr.vmem [resolvable:$true] %s187
      %193 = dma.vmem_to_hbm [thread:$0]  %s188, 1024, %s3, [#allocation3], 128, 128, 8
    $region17: #{linear_add_relu.1} parent=1 // pred_fallthru
      _
    // Predicated region
    $region18: #{linear_add_relu.1} parent=1 // pred_check
      _
    $region19: #{linear_add_relu.1} parent=1 // pred_check_branch
      %195 = sbr.rel (0) target = $region21
    $region20: #{linear_add_relu.1} parent=1 // pred_region
      %196 = dma.done [#allocation3], 1024
    $region21: #{linear_add_relu.1} parent=1 // pred_fallthru
      _
    %197 = vsyncpa [#allocation3], 1

</llo_original>
